<compile_context>
chip_gen: v7x
topology: tpu7x:2x2x1
jax: 0.10.0
libtpu: 0.0.40
codegen_flags: <defaults>
</compile_context>

<pallas_src>
import jax
import jax.numpy as jnp
from jax.experimental import pallas as pl
from jax.experimental.pallas import tpu as pltpu


def _weighted_mse_kernel(x_ref, t_ref, w_ref, o_ref):
    # In-kernel upcast (free: VPU work hidden under HBM DMA), f32 math, single
    # downcast on the store -> narrow-dtype inputs read half the bytes.
    x = x_ref[...].astype(jnp.float32)
    t = t_ref[...].astype(jnp.float32)
    w = w_ref[...].astype(jnp.float32)
    d = x - t
    o_ref[...] = (d * d * w).astype(o_ref.dtype)


_LANE_CANDIDATES = (4096, 2048, 1024, 512, 256, 128)  # widest lane-dense first
_ROW_ALIGN = 32   # sublane-pack-safe row multiple for f32/bf16/int8/fp8 blocks
_MIN_STEPS = 4    # keep >= 4 grid steps for non-tiny inputs (pipelining + 2 TCs)


def _per_array_tile_bytes():
    """~2 MiB/array on v5e/v6e; ~4 MiB/array on v7x (3.2 TB/s HBM, 64 MiB VMEM)."""
    try:
        info = pltpu.get_tpu_info()
        vmem = getattr(info, "vmem_capacity_bytes", None)
        if vmem is not None and vmem <= (96 << 20):
            # v7x-class TensorCore: 4 MiB tiles cut the ~0.35us/step overhead to
            # ~6%; worst case 4 f32 arrays x 2 buffers x 4 MiB = 32 MiB resident,
            # which still fits v7x's 64 MiB VMEM with headroom.
            return 4 << 20
    except Exception:
        pass
    return 2 << 20


def weighted_mse_loss(inp, target, weight):
    """Elementwise (input - target)**2 * weight via a Pallas TPU kernel.

    Matches the PyTorch module's forward (no reduction), including broadcasting
    of the three operands.
    """
    out_shape = jnp.broadcast_shapes(jnp.shape(inp), jnp.shape(target), jnp.shape(weight))
    out_dtype = jnp.result_type(inp.dtype, target.dtype, weight.dtype)
    # TODO(synk): a per-channel-weight BlockSpec/index_map path would avoid
    # materializing a broadcast `weight` in HBM; full broadcast keeps semantics.
    inp = jnp.broadcast_to(inp, out_shape)
    target = jnp.broadcast_to(target, out_shape)
    weight = jnp.broadcast_to(weight, out_shape)

    n_elems = inp.size
    if n_elems == 0:
        return jnp.zeros(out_shape, out_dtype)

    x_flat = inp.reshape(-1)
    t_flat = target.reshape(-1)
    w_flat = weight.reshape(-1)

    def _tail(lo):
        d = x_flat[lo:].astype(jnp.float32) - t_flat[lo:].astype(jnp.float32)
        return (d * d * w_flat[lo:].astype(jnp.float32)).astype(out_dtype)

    main = (n_elems // 128) * 128
    if main == 0:
        # Fewer than 128 elements total: a kernel launch costs more than XLA.
        return _tail(0).reshape(out_shape)

    # Widest lane dim (multiple of 128) that divides the aligned prefix exactly
    # -> no padding, no output slicing in the common case.
    lanes = 128
    for cand in _LANE_CANDIDATES:
        if main % cand == 0:
            lanes = cand
            break
    rows = main // lanes

    itemsizes = [jnp.dtype(a.dtype).itemsize for a in (inp, target, weight)]
    itemsizes.append(jnp.dtype(out_dtype).itemsize)
    itemsize_max = max(itemsizes)

    # Tile rows from a BYTE budget (per widest-dtype array), sublane-aligned, so
    # bf16/fp8 inputs stay at the ~2/4 MiB step-overhead sweet spot too.
    tile_bytes = _per_array_tile_bytes()
    tile_rows = max(8, (tile_bytes // (lanes * itemsize_max)) // _ROW_ALIGN * _ROW_ALIGN)

    # Never collapse to a single grid step for non-tiny inputs: >= 4 blocks keep
    # input-prefetch / compute / writeback overlapped and give both v7x
    # TensorCores work under dimension_semantics=("parallel",).
    per_operand_bytes = rows * lanes * itemsize_max
    if per_operand_bytes > (1 << 20):
        cap = max(8, (pl.cdiv(rows, _MIN_STEPS) + 7) // 8 * 8)
        tile_rows = min(tile_rows, cap)
    tile_rows = min(tile_rows, rows)
    grid = (pl.cdiv(rows, tile_rows),)

    # Common case (main == n_elems): no slicing -> no extra HBM copies.
    if main == n_elems:
        x_m, t_m, w_m = x_flat, t_flat, w_flat
    else:
        x_m, t_m, w_m = x_flat[:main], t_flat[:main], w_flat[:main]

    x2d = x_m.reshape(rows, lanes)
    t2d = t_m.reshape(rows, lanes)
    w2d = w_m.reshape(rows, lanes)

    spec = pl.BlockSpec((tile_rows, lanes), lambda i: (i, 0))

    # 2 pipeline buffers per array of the actual (native-dtype) tile bytes.
    resident = 2 * tile_rows * lanes * sum(itemsizes)
    vmem_limit = max(int(resident) + (4 << 20), 8 << 20)

    out2d = pl.pallas_call(
        _weighted_mse_kernel,
        out_shape=jax.ShapeDtypeStruct((rows, lanes), out_dtype),
        grid_spec=pltpu.PrefetchScalarGridSpec(
            num_scalar_prefetch=0,
            grid=grid,
            in_specs=[spec, spec, spec],
            out_specs=spec,
        ),
        compiler_params=pltpu.CompilerParams(
            dimension_semantics=("parallel",),  # megacore-shardable on v7x
            vmem_limit_bytes=vmem_limit,
        ),
    )(x2d, t2d, w2d)

    out_flat = out2d.reshape(-1)
    if main != n_elems:
        # <128-element tail: trivial in plain XLA, avoids padded-input copies.
        out_flat = jnp.concatenate([out_flat, _tail(main)])
    return out_flat.reshape(out_shape)


if __name__ == "__main__":
    key = jax.random.PRNGKey(0)
    k1, k2, k3 = jax.random.split(key, 3)

    # NCHW example shapes, consistent with a conv-style input
    shape = (2, 4, 16, 16)
    x = jax.random.normal(k1, shape, dtype=jnp.float32)
    t = jax.random.normal(k2, shape, dtype=jnp.float32)
    w = jax.random.uniform(k3, shape, dtype=jnp.float32)

    out = weighted_mse_loss(x, t, w)
    out = jax.block_until_ready(out)

    # correctness check against the plain-JAX reference
    ref = (x - t) ** 2 * w
    assert out.shape == ref.shape
    assert jnp.allclose(out, ref, atol=1e-6, rtol=1e-6)

    print("KERNEL_OK")
</pallas_src>

<mosaic_0001>
module attributes {stable_mosaic.version = 11 : i64} {
  func.func @_weighted_mse_kernel(%arg0: i32, %arg1: memref<1x2048xf32, #tpu.memory_space<vmem>>, %arg2: memref<1x2048xf32, #tpu.memory_space<vmem>>, %arg3: memref<1x2048xf32, #tpu.memory_space<vmem>>, %arg4: memref<1x2048xf32, #tpu.memory_space<vmem>>) attributes {dimension_semantics = [#tpu.dimension_semantics<parallel>], iteration_bounds = array<i64: 1>, scalar_prefetch = 0 : i64, scratch_operands = 0 : i64, tpu.core_type = #tpu.core_type<tc>, window_params = [{transform_indices = @transform_0, window_bounds = array<i64: 1, 2048>}, {transform_indices = @transform_1, window_bounds = array<i64: 1, 2048>}, {transform_indices = @transform_2, window_bounds = array<i64: 1, 2048>}, {transform_indices = @transform_3, window_bounds = array<i64: 1, 2048>}]} {
    %c0 = arith.constant 0 : index
    %c0_0 = arith.constant 0 : index
    %0 = vector.load %arg1[%c0, %c0_0] : memref<1x2048xf32, #tpu.memory_space<vmem>>, vector<1x2048xf32>
    %c0_1 = arith.constant 0 : index
    %c0_2 = arith.constant 0 : index
    %1 = vector.load %arg2[%c0_1, %c0_2] : memref<1x2048xf32, #tpu.memory_space<vmem>>, vector<1x2048xf32>
    %c0_3 = arith.constant 0 : index
    %c0_4 = arith.constant 0 : index
    %2 = vector.load %arg3[%c0_3, %c0_4] : memref<1x2048xf32, #tpu.memory_space<vmem>>, vector<1x2048xf32>
    %3 = arith.subf %0, %1 : vector<1x2048xf32>
    %4 = arith.mulf %3, %3 : vector<1x2048xf32>
    %5 = arith.mulf %4, %2 : vector<1x2048xf32>
    %c0_5 = arith.constant 0 : index
    %c0_6 = arith.constant 0 : index
    %6 = vector.load %arg4[%c0_5, %c0_6] : memref<1x2048xf32, #tpu.memory_space<vmem>>, vector<1x2048xf32>
    tpu.vector_store %arg4[%c0_5, %c0_6], %5 {strides = array<i32>} : memref<1x2048xf32, #tpu.memory_space<vmem>>, vector<1x2048xf32>,
    return
  }
  func.func @transform_0(%arg0: i32) -> (i32, i32) {
    %c0_i32 = arith.constant 0 : i32
    %c0_i32_0 = arith.constant 0 : i32
    return %arg0, %c0_i32 : i32, i32
  }
  func.func @transform_1(%arg0: i32) -> (i32, i32) {
    %c0_i32 = arith.constant 0 : i32
    %c0_i32_0 = arith.constant 0 : i32
    return %arg0, %c0_i32 : i32, i32
  }
  func.func @transform_2(%arg0: i32) -> (i32, i32) {
    %c0_i32 = arith.constant 0 : i32
    %c0_i32_0 = arith.constant 0 : i32
    return %arg0, %c0_i32 : i32, i32
  }
  func.func @transform_3(%arg0: i32) -> (i32, i32) {
    %c0_i32 = arith.constant 0 : i32
    %c0_i32_0 = arith.constant 0 : i32
    return %arg0, %c0_i32 : i32, i32
  }
}

</mosaic_0001>

<llo_original>
// kernel: tpu_custom_call.1
$region0: #{tpu_custom_call.1}
  #allocation0 [shape = 'u32[]', space=smem, size = 0x4, offset = 0x4, fixed_abs, tag = 'smem constant byte address 0x4 - core index']
  #allocation1 [shape = 'u32[144,128]{1,0:T(1,128)}', space=vmem, size = 0x12000, scoped, tag = 'internal scratch']
  %s0 = inlined_call_operand.hbm [shape: f32[1,2048], index: 0, kind: input, shape index: {}]
  %s1 = inlined_call_operand.hbm [shape: f32[1,2048], index: 1, kind: input, shape index: {}]
  %s2 = inlined_call_operand.hbm [shape: f32[1,2048], index: 2, kind: input, shape index: {}]
  %s3 = inlined_call_operand.hbm [shape: f32[1,2048], index: 3, kind: output, shape index: {}]
  %s4 = sld [smem:[#allocation0]]
  $region34: #{tpu_custom_call.1} parent=0
    _
  %s6 = ssub.s32 1, %s4
  %s7 = scalar_select 0, %s6, %s4
  $region1: #{tpu_custom_call.1} parent=0
    #allocation2 [shape = 'u8[8192]{0}', space=vmem, size = 0x2000, scoped, tag = 'input window, operand 0, single buffered']
    #allocation3 [shape = 's32[1]{0}', space=sflag, size = 0x4, scoped, tag = 'scoped memory for tpu_custom_call.1']
    #allocation4 [shape = 's32[1]{0}', space=sflag, size = 0x4, scoped, tag = 'scoped memory for tpu_custom_call.1']
    #allocation5 [shape = 'u8[8192]{0}', space=vmem, size = 0x2000, scoped, tag = 'input window, operand 1, single buffered']
    #allocation6 [shape = 's32[1]{0}', space=sflag, size = 0x4, scoped, tag = 'scoped memory for tpu_custom_call.1']
    #allocation7 [shape = 'u8[8192]{0}', space=vmem, size = 0x2000, scoped, tag = 'input window, operand 2, single buffered']
    #allocation8 [shape = 'u8[8192]{0}', space=vmem, size = 0x2000, scoped, tag = 'output window, operand 0, single buffered']
    %8 = vsyncpa [#allocation3], 0
    %9 = vsyncpa [#allocation6], 0
    %10 = vsyncpa [#allocation4], 0
    // Predicated region
    $region2: #{tpu_custom_call.1} parent=1 // pred_check
      _
    $region3: #{tpu_custom_call.1} parent=1 // pred_check_branch
      %12 = sbr.rel (0) target = $region5
    $region4: #{tpu_custom_call.1} parent=1 // pred_region
      %s14 = ssub.s32 256, 256
      %15 = vsyncadd [#allocation3], %s14
      %s17 = sshll.u32 [#allocation2], 4
      %s18 = int_to_ptr.vmem [resolvable:$true] %s17
      %20 = dma.hbm_to_vmem [thread:$0]  %s0, 256, %s18, [#allocation3]
    $region5: #{tpu_custom_call.1} parent=1 // pred_fallthru
      _
    // Predicated region
    $region6: #{tpu_custom_call.1} parent=1 // pred_check
      _
    $region7: #{tpu_custom_call.1} parent=1 // pred_check_branch
      %22 = sbr.rel (0) target = $region9
    $region8: #{tpu_custom_call.1} parent=1 // pred_region
      %s24 = ssub.s32 256, 256
      %25 = vsyncadd [#allocation6], %s24
      %s27 = sshll.u32 [#allocation5], 4
      %s28 = int_to_ptr.vmem [resolvable:$true] %s27
      %30 = dma.hbm_to_vmem [thread:$0]  %s1, 256, %s28, [#allocation6]
    $region9: #{tpu_custom_call.1} parent=1 // pred_fallthru
      _
    // Predicated region
    $region10: #{tpu_custom_call.1} parent=1 // pred_check
      _
    $region11: #{tpu_custom_call.1} parent=1 // pred_check_branch
      %32 = sbr.rel (0) target = $region13
    $region12: #{tpu_custom_call.1} parent=1 // pred_region
      %s34 = ssub.s32 256, 256
      %35 = vsyncadd [#allocation6], %s34
      %s37 = sshll.u32 [#allocation7], 4
      %s38 = int_to_ptr.vmem [resolvable:$true] %s37
      %40 = dma.hbm_to_vmem [thread:$0]  %s2, 256, %s38, [#allocation6]
    $region13: #{tpu_custom_call.1} parent=1 // pred_fallthru
      _
    // Predicated region
    $region14: #{tpu_custom_call.1} parent=1 // pred_check
      _
    $region15: #{tpu_custom_call.1} parent=1 // pred_check_branch
      %42 = sbr.rel (0) target = $region17
    $region16: #{tpu_custom_call.1} parent=1 // pred_region
      %43 = dma.done [#allocation3], 256
    $region17: #{tpu_custom_call.1} parent=1 // pred_fallthru
      _
    // Predicated region
    $region18: #{tpu_custom_call.1} parent=1 // pred_check
      _
    $region19: #{tpu_custom_call.1} parent=1 // pred_check_branch
      %45 = sbr.rel (0) target = $region21
    $region20: #{tpu_custom_call.1} parent=1 // pred_region
      %46 = dma.done [#allocation6], 256
    $region21: #{tpu_custom_call.1} parent=1 // pred_fallthru
      _
    // Predicated region
    $region22: #{tpu_custom_call.1} parent=1 // pred_check
      _
    $region23: #{tpu_custom_call.1} parent=1 // pred_check_branch
      %48 = sbr.rel (0) target = $region25
    $region24: #{tpu_custom_call.1} parent=1 // pred_region
      %49 = dma.done [#allocation6], 256
    $region25: #{tpu_custom_call.1} parent=1 // pred_fallthru
      _
    %v50 = vld [vmem:[#allocation2] sm:$0xff]
    %v51 = vld [vmem:[#allocation2 + $0x8] sm:$0xff]
    %v52 = vld [vmem:[#allocation5] sm:$0xff]
    %v53 = vld [vmem:[#allocation5 + $0x8] sm:$0xff]
    %v54 = vld [vmem:[#allocation7] sm:$0xff]
    %v55 = vld [vmem:[#allocation7 + $0x8] sm:$0xff]
    %v56 = vsub.f32 %v50, %v52
    %v57 = vsub.f32 %v51, %v53
    %v58 = vmul.f32 %v56, %v56
    %v59 = vmul.f32 %v57, %v57
    %v60 = vmul.f32 %v58, %v54
    %v61 = vmul.f32 %v59, %v55
    %62 = vst [vmem:[#allocation8] sm:$0xff] %v60
    %63 = vst [vmem:[#allocation8 + $0x8] sm:$0xff] %v61
    // Predicated region
    $region26: #{tpu_custom_call.1} parent=1 // pred_check
      _
    $region27: #{tpu_custom_call.1} parent=1 // pred_check_branch
      %65 = sbr.rel (0) target = $region29
    $region28: #{tpu_custom_call.1} parent=1 // pred_region
      %s67 = ssub.s32 256, 256
      %68 = vsyncadd [#allocation4], %s67
      %s70 = sshll.u32 [#allocation8], 4
      %s71 = int_to_ptr.vmem [resolvable:$true] %s70
      %73 = dma.vmem_to_hbm [thread:$0]  %s71, 256, %s3, [#allocation4]
    $region29: #{tpu_custom_call.1} parent=1 // pred_fallthru
      _
    // Predicated region
    $region30: #{tpu_custom_call.1} parent=1 // pred_check
      _
    $region31: #{tpu_custom_call.1} parent=1 // pred_check_branch
      %75 = sbr.rel (0) target = $region33
    $region32: #{tpu_custom_call.1} parent=1 // pred_region
      %76 = dma.done [#allocation4], 256
    $region33: #{tpu_custom_call.1} parent=1 // pred_fallthru
      _
    %77 = vsyncpa [#allocation3], 1
    %78 = vsyncpa [#allocation6], 1
    %79 = vsyncpa [#allocation4], 1

</llo_original>
